<compile_context>
chip_gen: v6e
topology: v6e:2x2x1
jax: 0.10.0
libtpu: 0.0.40
codegen_flags: <defaults>
</compile_context>

<pallas_src>
import functools
import math

import jax
import jax.numpy as jnp
from jax.experimental import pallas as pl
from jax.experimental.pallas import tpu as pltpu

LOG_SIG_MAX = 2.0
LOG_SIG_MIN = -20.0
LEAKY_SLOPE = 0.01  # nn.LeakyReLU default negative_slope
LANE = 128


def _round_up(n, m):
    return ((n + m - 1) // m) * m


def _leaky_relu(x):
    return jnp.where(x >= 0, x, LEAKY_SLOPE * x)


def actor_kernel(num_actions,
                 x_ref,
                 w1_ref, b1_ref,
                 w2_ref, b2_ref,
                 w3_ref, b3_ref,
                 wh_ref, bh_ref,
                 out_ref):
    x = x_ref[...]

    # shared MLP: Linear -> LeakyReLU -> Linear -> LeakyReLU -> Linear
    h = jnp.dot(x, w1_ref[...], preferred_element_type=jnp.float32) + b1_ref[...]
    h = _leaky_relu(h)
    h = jnp.dot(h, w2_ref[...], preferred_element_type=jnp.float32) + b2_ref[...]
    h = _leaky_relu(h)
    h = jnp.dot(h, w3_ref[...], preferred_element_type=jnp.float32) + b3_ref[...]

    # fused heads: one matmul producing [rows_tile, OUT_PAD] where
    # cols [0, A) = mean, cols [A, 2A) = log_std, the rest is zero padding.
    out = jnp.dot(h, wh_ref[...], preferred_element_type=jnp.float32) + bh_ref[...]

    # clamp only the log_std lanes
    col = jax.lax.broadcasted_iota(jnp.int32, out.shape, 1)
    is_log_std = (col >= num_actions) & (col < 2 * num_actions)
    out = jnp.where(is_log_std, jnp.clip(out, LOG_SIG_MIN, LOG_SIG_MAX), out)

    out_ref[...] = out.astype(out_ref.dtype)


def prepare_params(params):
    """One-time host-side padding / head fusion.

    Input params are raw ([in, out] weights, [1, out] biases); output is the
    padded, head-fused tuple the kernel consumes.
    """
    w1, b1, w2, b2, w3, b3, wm, bm, ws, bs = params
    features, hidden = w1.shape
    num_actions = wm.shape[-1]

    h_pad = _round_up(hidden, LANE)
    out_pad = _round_up(2 * num_actions, LANE)

    def pad_w(w, rows, cols):
        return jnp.pad(w, ((0, rows - w.shape[0]), (0, cols - w.shape[1])))

    def pad_b(b, cols):
        return jnp.pad(b, ((0, 0), (0, cols - b.shape[1])))

    w1p = pad_w(w1, features, h_pad)
    w2p = pad_w(w2, h_pad, h_pad)
    w3p = pad_w(w3, h_pad, h_pad)
    wh = pad_w(jnp.concatenate([wm, ws], axis=1), h_pad, out_pad)
    b1p = pad_b(b1, h_pad)
    b2p = pad_b(b2, h_pad)
    b3p = pad_b(b3, h_pad)
    bh = pad_b(jnp.concatenate([bm, bs], axis=1), out_pad)
    return (w1p, b1p, w2p, b2p, w3p, b3p, wh, bh)


@functools.partial(jax.jit, static_argnames=("num_actions", "row_tile"))
def actor_forward(x, prepared, *, num_actions, row_tile=512):
    """x: [..., features] -> (mean, log_std), each [..., num_actions]."""
    w1, b1, w2, b2, w3, b3, wh, bh = prepared
    features = x.shape[-1]
    lead = x.shape[:-1]
    rows = math.prod(lead) if lead else 1
    out_pad = wh.shape[-1]

    # Row tile: multiple of 8 sublanes; pad rows so the grid divides evenly.
    tr = min(row_tile, _round_up(rows, 8))
    rows_padded = _round_up(rows, tr)

    x2d = x.reshape(rows, features)
    x2d = jnp.pad(x2d, ((0, rows_padded - rows), (0, 0)))

    const2d = lambda shape: pl.BlockSpec(shape, lambda i: (0, 0))

    out_slab = pl.pallas_call(
        functools.partial(actor_kernel, num_actions),
        out_shape=jax.ShapeDtypeStruct((rows_padded, out_pad), jnp.float32),
        grid=(rows_padded // tr,),
        in_specs=[
            pl.BlockSpec((tr, features), lambda i: (i, 0)),
            const2d(w1.shape), const2d(b1.shape),
            const2d(w2.shape), const2d(b2.shape),
            const2d(w3.shape), const2d(b3.shape),
            const2d(wh.shape), const2d(bh.shape),
        ],
        out_specs=pl.BlockSpec((tr, out_pad), lambda i: (i, 0)),
        compiler_params=pltpu.CompilerParams(
            dimension_semantics=("parallel",),
            vmem_limit_bytes=32 * 1024 * 1024,
        ),
    )(x2d, w1, b1, w2, b2, w3, b3, wh, bh)

    out2d = out_slab[:rows]
    mean = out2d[:, :num_actions].reshape(*lead, num_actions)
    log_std = out2d[:, num_actions:2 * num_actions].reshape(*lead, num_actions)
    return mean, log_std


def init_params(key, features, hidden, num_actions):
    """Deterministic synthetic params. Weights stored [in, out]; biases [1, out]."""
    ks = jax.random.split(key, 10)

    def lin(k_w, k_b, fan_in, fan_out):
        bound = 1.0 / jnp.sqrt(fan_in)
        w = jax.random.uniform(k_w, (fan_in, fan_out), jnp.float32, -bound, bound)
        b = jax.random.uniform(k_b, (1, fan_out), jnp.float32, -bound, bound)
        return w, b

    w1, b1 = lin(ks[0], ks[1], features, hidden)
    w2, b2 = lin(ks[2], ks[3], hidden, hidden)
    w3, b3 = lin(ks[4], ks[5], hidden, hidden)
    wm, bm = lin(ks[6], ks[7], hidden, num_actions)
    ws, bs = lin(ks[8], ks[9], hidden, num_actions)
    return (w1, b1, w2, b2, w3, b3, wm, bm, ws, bs)


def reference_forward(x, params):
    """Pure-JAX reference of ActorNet.forward for correctness check."""
    w1, b1, w2, b2, w3, b3, wm, bm, ws, bs = params
    h = jax.nn.leaky_relu(x @ w1 + b1, LEAKY_SLOPE)
    h = jax.nn.leaky_relu(h @ w2 + b2, LEAKY_SLOPE)
    h = h @ w3 + b3
    mean = h @ wm + bm
    log_std = jnp.clip(h @ ws + bs, LOG_SIG_MIN, LOG_SIG_MAX)
    return mean, log_std


def _check(x, params, prepared, num_actions):
    mean, log_std = actor_forward(x, prepared, num_actions=num_actions)
    mean, log_std = jax.block_until_ready((mean, log_std))

    features = x.shape[-1]
    lead = x.shape[:-1]
    mean_ref, log_std_ref = reference_forward(x.reshape(-1, features), params)
    mean_ref = mean_ref.reshape(*lead, num_actions)
    log_std_ref = log_std_ref.reshape(*lead, num_actions)

    assert mean.shape == (*lead, num_actions)
    assert log_std.shape == (*lead, num_actions)
    assert jnp.allclose(mean, mean_ref, atol=1e-4, rtol=1e-4)
    assert jnp.allclose(log_std, log_std_ref, atol=1e-4, rtol=1e-4)


if __name__ == "__main__":
    key = jax.random.PRNGKey(0)

    # state_dim = (n_agents, features), action_dim = (n_agents, num_actions)
    batch, n_agents, features = 2, 4, 16
    hidden, num_actions = 32, 8

    k_x, k_p, k_x2 = jax.random.split(key, 3)
    params = init_params(k_p, features, hidden, num_actions)
    prepared = prepare_params(params)

    # small case (single row tile, grid=(1,))
    x_small = jax.random.normal(k_x, (batch, n_agents, features), jnp.float32)
    _check(x_small, params, prepared, num_actions)

    # larger case exercising the row-tiled grid (rows=1024 -> 2 tiles of 512)
    x_big = jax.random.normal(k_x2, (64, 16, features), jnp.float32)
    _check(x_big, params, prepared, num_actions)

    # TODO(synk): ActorNet.sample() (rsample / tanh-squash / log_prob) is a
    # stochastic host-level method, not part of forward(); left out of kernel.
    print("KERNEL_OK")
</pallas_src>

<mosaic_0001>
module attributes {stable_mosaic.version = 11 : i64} {
  func.func @actor_kernel(%arg0: i32, %arg1: memref<8x16xf32, #tpu.memory_space<vmem>>, %arg2: memref<16x128xf32, #tpu.memory_space<vmem>>, %arg3: memref<1x128xf32, #tpu.memory_space<vmem>>, %arg4: memref<128x128xf32, #tpu.memory_space<vmem>>, %arg5: memref<1x128xf32, #tpu.memory_space<vmem>>, %arg6: memref<128x128xf32, #tpu.memory_space<vmem>>, %arg7: memref<1x128xf32, #tpu.memory_space<vmem>>, %arg8: memref<128x128xf32, #tpu.memory_space<vmem>>, %arg9: memref<1x128xf32, #tpu.memory_space<vmem>>, %arg10: memref<8x128xf32, #tpu.memory_space<vmem>>) attributes {dimension_semantics = [#tpu.dimension_semantics<parallel>], iteration_bounds = array<i64: 1>, scalar_prefetch = 0 : i64, scratch_operands = 0 : i64, tpu.core_type = #tpu.core_type<tc>, window_params = [{transform_indices = @transform_0, window_bounds = array<i64: 8, 16>}, {pipeline_mode = #tpu.pipeline_mode<synchronous>, transform_indices = @transform_1, window_bounds = array<i64: 16, 128>}, {pipeline_mode = #tpu.pipeline_mode<synchronous>, transform_indices = @transform_2, window_bounds = array<i64: 1, 128>}, {pipeline_mode = #tpu.pipeline_mode<synchronous>, transform_indices = @transform_3, window_bounds = array<i64: 128, 128>}, {pipeline_mode = #tpu.pipeline_mode<synchronous>, transform_indices = @transform_4, window_bounds = array<i64: 1, 128>}, {pipeline_mode = #tpu.pipeline_mode<synchronous>, transform_indices = @transform_5, window_bounds = array<i64: 128, 128>}, {pipeline_mode = #tpu.pipeline_mode<synchronous>, transform_indices = @transform_6, window_bounds = array<i64: 1, 128>}, {pipeline_mode = #tpu.pipeline_mode<synchronous>, transform_indices = @transform_7, window_bounds = array<i64: 128, 128>}, {pipeline_mode = #tpu.pipeline_mode<synchronous>, transform_indices = @transform_8, window_bounds = array<i64: 1, 128>}, {transform_indices = @transform_9, window_bounds = array<i64: 8, 128>}]} {
    %c0 = arith.constant 0 : index
    %c0_0 = arith.constant 0 : index
    %0 = vector.load %arg1[%c0, %c0_0] : memref<8x16xf32, #tpu.memory_space<vmem>>, vector<8x16xf32>
    %c0_1 = arith.constant 0 : index
    %c0_2 = arith.constant 0 : index
    %1 = vector.load %arg2[%c0_1, %c0_2] : memref<16x128xf32, #tpu.memory_space<vmem>>, vector<16x128xf32>
    %cst = arith.constant dense<0.000000e+00> : vector<8x128xf32>
    %2 = tpu.matmul %0, %1, %cst {dimension_numbers = #tpu.dot_dimension_numbers<[1], [0], [0], [1], [0, 0, 1, 1], [], []>} : vector<8x16xf32>, vector<16x128xf32>, vector<8x128xf32> -> vector<8x128xf32>
    %c0_3 = arith.constant 0 : index
    %c0_4 = arith.constant 0 : index
    %3 = vector.load %arg3[%c0_3, %c0_4] : memref<1x128xf32, #tpu.memory_space<vmem>>, vector<1x128xf32>
    %4 = vector.broadcast %3 : vector<1x128xf32> to vector<8x128xf32>
    %5 = arith.addf %2, %4 : vector<8x128xf32>
    %cst_5 = arith.constant 0.000000e+00 : f32
    %6 = vector.broadcast %cst_5 : f32 to vector<8x128xf32>
    %7 = arith.cmpf oge, %5, %6 : vector<8x128xf32>
    %cst_6 = arith.constant 0.00999999977 : f32
    %8 = vector.broadcast %cst_6 : f32 to vector<8x128xf32>
    %9 = arith.mulf %8, %5 : vector<8x128xf32>
    %10 = arith.select %7, %5, %9 : vector<8x128xi1>, vector<8x128xf32>
    %c0_7 = arith.constant 0 : index
    %c0_8 = arith.constant 0 : index
    %11 = vector.load %arg4[%c0_7, %c0_8] : memref<128x128xf32, #tpu.memory_space<vmem>>, vector<128x128xf32>
    %cst_9 = arith.constant dense<0.000000e+00> : vector<8x128xf32>
    %12 = tpu.matmul %10, %11, %cst_9 {dimension_numbers = #tpu.dot_dimension_numbers<[1], [0], [0], [1], [0, 0, 1, 1], [], []>} : vector<8x128xf32>, vector<128x128xf32>, vector<8x128xf32> -> vector<8x128xf32>
    %c0_10 = arith.constant 0 : index
    %c0_11 = arith.constant 0 : index
    %13 = vector.load %arg5[%c0_10, %c0_11] : memref<1x128xf32, #tpu.memory_space<vmem>>, vector<1x128xf32>
    %14 = vector.broadcast %13 : vector<1x128xf32> to vector<8x128xf32>
    %15 = arith.addf %12, %14 : vector<8x128xf32>
    %cst_12 = arith.constant 0.000000e+00 : f32
    %16 = vector.broadcast %cst_12 : f32 to vector<8x128xf32>
    %17 = arith.cmpf oge, %15, %16 : vector<8x128xf32>
    %cst_13 = arith.constant 0.00999999977 : f32
    %18 = vector.broadcast %cst_13 : f32 to vector<8x128xf32>
    %19 = arith.mulf %18, %15 : vector<8x128xf32>
    %20 = arith.select %17, %15, %19 : vector<8x128xi1>, vector<8x128xf32>
    %c0_14 = arith.constant 0 : index
    %c0_15 = arith.constant 0 : index
    %21 = vector.load %arg6[%c0_14, %c0_15] : memref<128x128xf32, #tpu.memory_space<vmem>>, vector<128x128xf32>
    %cst_16 = arith.constant dense<0.000000e+00> : vector<8x128xf32>
    %22 = tpu.matmul %20, %21, %cst_16 {dimension_numbers = #tpu.dot_dimension_numbers<[1], [0], [0], [1], [0, 0, 1, 1], [], []>} : vector<8x128xf32>, vector<128x128xf32>, vector<8x128xf32> -> vector<8x128xf32>
    %c0_17 = arith.constant 0 : index
    %c0_18 = arith.constant 0 : index
    %23 = vector.load %arg7[%c0_17, %c0_18] : memref<1x128xf32, #tpu.memory_space<vmem>>, vector<1x128xf32>
    %24 = vector.broadcast %23 : vector<1x128xf32> to vector<8x128xf32>
    %25 = arith.addf %22, %24 : vector<8x128xf32>
    %c0_19 = arith.constant 0 : index
    %c0_20 = arith.constant 0 : index
    %26 = vector.load %arg8[%c0_19, %c0_20] : memref<128x128xf32, #tpu.memory_space<vmem>>, vector<128x128xf32>
    %cst_21 = arith.constant dense<0.000000e+00> : vector<8x128xf32>
    %27 = tpu.matmul %25, %26, %cst_21 {dimension_numbers = #tpu.dot_dimension_numbers<[1], [0], [0], [1], [0, 0, 1, 1], [], []>} : vector<8x128xf32>, vector<128x128xf32>, vector<8x128xf32> -> vector<8x128xf32>
    %c0_22 = arith.constant 0 : index
    %c0_23 = arith.constant 0 : index
    %28 = vector.load %arg9[%c0_22, %c0_23] : memref<1x128xf32, #tpu.memory_space<vmem>>, vector<1x128xf32>
    %29 = vector.broadcast %28 : vector<1x128xf32> to vector<8x128xf32>
    %30 = arith.addf %27, %29 : vector<8x128xf32>
    %31 = tpu.iota {dimensions = array<i32: 1>} : vector<8x128xi32>
    %c8_i32 = arith.constant 8 : i32
    %32 = vector.broadcast %c8_i32 : i32 to vector<8x128xi32>
    %33 = arith.cmpi sge, %31, %32 : vector<8x128xi32>
    %c16_i32 = arith.constant 16 : i32
    %34 = vector.broadcast %c16_i32 : i32 to vector<8x128xi32>
    %35 = arith.cmpi slt, %31, %34 : vector<8x128xi32>
    %36 = arith.andi %33, %35 : vector<8x128xi1>
    %cst_24 = arith.constant -2.000000e+01 : f32
    %cst_25 = arith.constant 2.000000e+00 : f32
    %37 = vector.broadcast %cst_24 : f32 to vector<8x128xf32>
    %38 = arith.maximumf %37, %30 : vector<8x128xf32>
    %39 = vector.broadcast %cst_25 : f32 to vector<8x128xf32>
    %40 = arith.minimumf %39, %38 : vector<8x128xf32>
    %41 = arith.select %36, %40, %30 : vector<8x128xi1>, vector<8x128xf32>
    %c0_26 = arith.constant 0 : index
    %c0_27 = arith.constant 0 : index
    %42 = vector.load %arg10[%c0_26, %c0_27] : memref<8x128xf32, #tpu.memory_space<vmem>>, vector<8x128xf32>
    tpu.vector_store %arg10[%c0_26, %c0_27], %41 {strides = array<i32>} : memref<8x128xf32, #tpu.memory_space<vmem>>, vector<8x128xf32>,
    return
  }
  func.func @transform_0(%arg0: i32) -> (i32, i32) {
    %c0_i32 = arith.constant 0 : i32
    %c0_i32_0 = arith.constant 0 : i32
    return %arg0, %c0_i32 : i32, i32
  }
  func.func @transform_1(%arg0: i32) -> (i32, i32) {
    %c0_i32 = arith.constant 0 : i32
    %c0_i32_0 = arith.constant 0 : i32
    %c0_i32_1 = arith.constant 0 : i32
    return %c0_i32, %c0_i32_0 : i32, i32
  }
  func.func @transform_2(%arg0: i32) -> (i32, i32) {
    %c0_i32 = arith.constant 0 : i32
    %c0_i32_0 = arith.constant 0 : i32
    %c0_i32_1 = arith.constant 0 : i32
    return %c0_i32, %c0_i32_0 : i32, i32
  }
  func.func @transform_3(%arg0: i32) -> (i32, i32) {
    %c0_i32 = arith.constant 0 : i32
    %c0_i32_0 = arith.constant 0 : i32
    %c0_i32_1 = arith.constant 0 : i32
    return %c0_i32, %c0_i32_0 : i32, i32
  }
  func.func @transform_4(%arg0: i32) -> (i32, i32) {
    %c0_i32 = arith.constant 0 : i32
    %c0_i32_0 = arith.constant 0 : i32
    %c0_i32_1 = arith.constant 0 : i32
    return %c0_i32, %c0_i32_0 : i32, i32
  }
  func.func @transform_5(%arg0: i32) -> (i32, i32) {
    %c0_i32 = arith.constant 0 : i32
    %c0_i32_0 = arith.constant 0 : i32
    %c0_i32_1 = arith.constant 0 : i32
    return %c0_i32, %c0_i32_0 : i32, i32
  }
  func.func @transform_6(%arg0: i32) -> (i32, i32) {
    %c0_i32 = arith.constant 0 : i32
    %c0_i32_0 = arith.constant 0 : i32
    %c0_i32_1 = arith.constant 0 : i32
    return %c0_i32, %c0_i32_0 : i32, i32
  }
  func.func @transform_7(%arg0: i32) -> (i32, i32) {
    %c0_i32 = arith.constant 0 : i32
    %c0_i32_0 = arith.constant 0 : i32
    %c0_i32_1 = arith.constant 0 : i32
    return %c0_i32, %c0_i32_0 : i32, i32
  }
  func.func @transform_8(%arg0: i32) -> (i32, i32) {
    %c0_i32 = arith.constant 0 : i32
    %c0_i32_0 = arith.constant 0 : i32
    %c0_i32_1 = arith.constant 0 : i32
    return %c0_i32, %c0_i32_0 : i32, i32
  }
  func.func @transform_9(%arg0: i32) -> (i32, i32) {
    %c0_i32 = arith.constant 0 : i32
    %c0_i32_0 = arith.constant 0 : i32
    return %arg0, %c0_i32 : i32, i32
  }
}

</mosaic_0001>

<llo_original>
// kernel: actor_forward.1
$region0: #{actor_forward.1}
  #allocation0 [shape = 'u32[]', space=smem, size = 0x4, offset = 0x4, fixed_abs, tag = 'smem constant byte address 0x4 - core index']
  #allocation1 [shape = 'u32[144,128]{1,0:T(1,128)}', space=vmem, size = 0x12000, scoped, tag = 'internal scratch']
  %s0 = inlined_call_operand.hbm [shape: f32[8,16], index: 0, kind: input, shape index: {}]
  %s1 = inlined_call_operand.hbm [shape: f32[16,128], index: 1, kind: input, shape index: {}]
  %s2 = inlined_call_operand.vmem [shape: f32[1,128], index: 2, kind: input, shape index: {}]
  %s3 = inlined_call_operand.hbm [shape: f32[128,128], index: 3, kind: input, shape index: {}]
  %s4 = inlined_call_operand.vmem [shape: f32[1,128], index: 4, kind: input, shape index: {}]
  %s5 = inlined_call_operand.hbm [shape: f32[128,128], index: 5, kind: input, shape index: {}]
  %s6 = inlined_call_operand.vmem [shape: f32[1,128], index: 6, kind: input, shape index: {}]
  %s7 = inlined_call_operand.hbm [shape: f32[128,128], index: 7, kind: input, shape index: {}]
  %s8 = inlined_call_operand.vmem [shape: f32[1,128], index: 8, kind: input, shape index: {}]
  %s9 = inlined_call_operand.vmem [shape: f32[8,128], index: 9, kind: output, shape index: {}]
  %s10 = sld [smem:[#allocation0]]
  $region66: #{actor_forward.1} parent=0
    _
  %s12 = ssub.s32 1, %s10
  %s13 = scalar_select 0, %s12, %s10
  $region1: #{actor_forward.1} parent=0
    #allocation2 [shape = 'u8[4096]{0}', space=vmem, size = 0x1000, scoped, tag = 'input window, operand 0, single buffered']
    #allocation3 [shape = 's32[1]{0}', space=sflag, size = 0x4, scoped, tag = 'scoped memory for actor_forward.1']
    #allocation4 [shape = 'u8[8192]{0}', space=vmem, size = 0x2000, scoped, tag = 'input window, operand 1, single buffered']
    #allocation5 [shape = 's32[1]{0}', space=sflag, size = 0x4, scoped, tag = 'scoped memory for actor_forward.1']
    #allocation6 [shape = 'u8[65536]{0}', space=vmem, size = 0x10000, scoped, tag = 'input window, operand 3, single buffered']
    #allocation7 [shape = 'u8[65536]{0}', space=vmem, size = 0x10000, scoped, tag = 'input window, operand 5, single buffered']
    #allocation8 [shape = 's32[1]{0}', space=sflag, size = 0x4, scoped, tag = 'scoped memory for actor_forward.1']
    #allocation9 [shape = 'u8[65536]{0}', space=vmem, size = 0x10000, scoped, tag = 'input window, operand 7, single buffered']
    %14 = vsyncpa [#allocation3], 0
    %15 = vsyncpa [#allocation5], 0
    %16 = vsyncpa [#allocation8], 0
    // Predicated region
    $region2: #{actor_forward.1} parent=1 // pred_check
      _
    $region3: #{actor_forward.1} parent=1 // pred_check_branch
      %18 = sbr.rel (0) target = $region5
    $region4: #{actor_forward.1} parent=1 // pred_region
      %s20 = ssub.s32 128, 128
      %21 = vsyncadd [#allocation3], %s20
      %s23 = sshll.u32 [#allocation2], 4
      %s24 = int_to_ptr.vmem [resolvable:$true] %s23
      %26 = dma.hbm_to_vmem [thread:$0]  %s0, 128, %s24, [#allocation3]
    $region5: #{actor_forward.1} parent=1 // pred_fallthru
      _
    // Predicated region
    $region6: #{actor_forward.1} parent=1 // pred_check
      _
    $region7: #{actor_forward.1} parent=1 // pred_check_branch
      %28 = sbr.rel (0) target = $region9
    $region8: #{actor_forward.1} parent=1 // pred_region
      %s30 = ssub.s32 256, 256
      %31 = vsyncadd [#allocation5], %s30
      %s32 = sshll.u32 [#allocation4], 4
      %s33 = int_to_ptr.vmem [resolvable:$true] %s32
      %38 = dma.hbm_to_vmem [thread:$0]  %s1, 256, %s33, [#allocation5], 128, 128, 8
    $region9: #{actor_forward.1} parent=1 // pred_fallthru
      _
    // Predicated region
    $region10: #{actor_forward.1} parent=1 // pred_check
      _
    $region11: #{actor_forward.1} parent=1 // pred_check_branch
      %40 = sbr.rel (0) target = $region13
    $region12: #{actor_forward.1} parent=1 // pred_region
      _
    $region13: #{actor_forward.1} parent=1 // pred_fallthru
      _
    // Predicated region
    $region14: #{actor_forward.1} parent=1 // pred_check
      _
    $region15: #{actor_forward.1} parent=1 // pred_check_branch
      %42 = sbr.rel (0) target = $region17
    $region16: #{actor_forward.1} parent=1 // pred_region
      %s44 = ssub.s32 2048, 2048
      %45 = vsyncadd [#allocation5], %s44
      %s46 = sshll.u32 [#allocation6], 4
      %s47 = int_to_ptr.vmem [resolvable:$true] %s46
      %52 = dma.hbm_to_vmem [thread:$0]  %s3, 2048, %s47, [#allocation5], 128, 128, 8
    $region17: #{actor_forward.1} parent=1 // pred_fallthru
      _
    // Predicated region
    $region18: #{actor_forward.1} parent=1 // pred_check
      _
    $region19: #{actor_forward.1} parent=1 // pred_check_branch
      %54 = sbr.rel (0) target = $region21
    $region20: #{actor_forward.1} parent=1 // pred_region
      _
    $region21: #{actor_forward.1} parent=1 // pred_fallthru
      _
    // Predicated region
    $region22: #{actor_forward.1} parent=1 // pred_check
      _
    $region23: #{actor_forward.1} parent=1 // pred_check_branch
      %56 = sbr.rel (0) target = $region25
    $region24: #{actor_forward.1} parent=1 // pred_region
      %s58 = ssub.s32 2048, 2048
      %59 = vsyncadd [#allocation8], %s58
      %s60 = sshll.u32 [#allocation7], 4
      %s61 = int_to_ptr.vmem [resolvable:$true] %s60
      %66 = dma.hbm_to_vmem [thread:$0]  %s5, 2048, %s61, [#allocation8], 128, 128, 8
    $region25: #{actor_forward.1} parent=1 // pred_fallthru
      _
    // Predicated region
    $region26: #{actor_forward.1} parent=1 // pred_check
      _
    $region27: #{actor_forward.1} parent=1 // pred_check_branch
      %68 = sbr.rel (0) target = $region29
    $region28: #{actor_forward.1} parent=1 // pred_region
      _
    $region29: #{actor_forward.1} parent=1 // pred_fallthru
      _
    // Predicated region
    $region30: #{actor_forward.1} parent=1 // pred_check
      _
    $region31: #{actor_forward.1} parent=1 // pred_check_branch
      %70 = sbr.rel (0) target = $region33
    $region32: #{actor_forward.1} parent=1 // pred_region
      %s72 = ssub.s32 2048, 2048
      %73 = vsyncadd [#allocation8], %s72
      %s74 = sshll.u32 [#allocation9], 4
      %s75 = int_to_ptr.vmem [resolvable:$true] %s74
      %80 = dma.hbm_to_vmem [thread:$0]  %s7, 2048, %s75, [#allocation8], 128, 128, 8
    $region33: #{actor_forward.1} parent=1 // pred_fallthru
      _
    // Predicated region
    $region34: #{actor_forward.1} parent=1 // pred_check
      _
    $region35: #{actor_forward.1} parent=1 // pred_check_branch
      %82 = sbr.rel (0) target = $region37
    $region36: #{actor_forward.1} parent=1 // pred_region
      _
    $region37: #{actor_forward.1} parent=1 // pred_fallthru
      _
    // Predicated region
    $region38: #{actor_forward.1} parent=1 // pred_check
      _
    $region39: #{actor_forward.1} parent=1 // pred_check_branch
      %84 = sbr.rel (0) target = $region41
    $region40: #{actor_forward.1} parent=1 // pred_region
      %85 = dma.done [#allocation3], 128
    $region41: #{actor_forward.1} parent=1 // pred_fallthru
      _
    // Predicated region
    $region42: #{actor_forward.1} parent=1 // pred_check
      _
    $region43: #{actor_forward.1} parent=1 // pred_check_branch
      %87 = sbr.rel (0) target = $region45
    $region44: #{actor_forward.1} parent=1 // pred_region
      %88 = dma.done [#allocation5], 256
    $region45: #{actor_forward.1} parent=1 // pred_fallthru
      _
    // Predicated region
    $region46: #{actor_forward.1} parent=1 // pred_check
      _
    $region47: #{actor_forward.1} parent=1 // pred_check_branch
      %90 = sbr.rel (0) target = $region49
    $region48: #{actor_forward.1} parent=1 // pred_region
      %91 = dma.done [#allocation5], 2048
    $region49: #{actor_forward.1} parent=1 // pred_fallthru
      _
    // Predicated region
    $region50: #{actor_forward.1} parent=1 // pred_check
      _
    $region51: #{actor_forward.1} parent=1 // pred_check_branch
      %93 = sbr.rel (0) target = $region53
    $region52: #{actor_forward.1} parent=1 // pred_region
      %94 = dma.done [#allocation8], 2048
    $region53: #{actor_forward.1} parent=1 // pred_fallthru
      _
    // Predicated region
    $region54: #{actor_forward.1} parent=1 // pred_check
      _
    $region55: #{actor_forward.1} parent=1 // pred_check_branch
      %96 = sbr.rel (0) target = $region57
    $region56: #{actor_forward.1} parent=1 // pred_region
      %97 = dma.done [#allocation8], 2048
    $region57: #{actor_forward.1} parent=1 // pred_fallthru
      _
    %v98 = vld [vmem:[#allocation2] sm:$0xff]
    %v99 = vld [vmem:[#allocation4] sm:$0xff]
    %v100 = vld [vmem:[#allocation4 + $0x8] sm:$0xff]
    %v101 = vld [vmem:[%s2] sm:$0x1]
    %v103 = vlaneseq
    %v104 = vshrl.u32 %v103, 7
    %v105 = vsub.s32 0, %v104
    %v106 = vrot.slane %v101, %v105
    %vm108 = vcmask 130048
    %v110 = vsel %vm108, %v98, 0
    %112 = vmatprep.subr.mxu0 0.0
    %113 = vmatpush1.msra.mxu0 0.0
    %114 = vmatprep.subr.mxu0 0.0
    %115 = vmatpush1.msra.mxu0 0.0
    %116 = vmatprep.subr.mxu0 0.0
    %117 = vmatpush1.msra.mxu0 0.0
    %118 = vmatprep.subr.mxu0 0.0
    %119 = vmatpush1.msra.mxu0 0.0
    %120 = vmatprep.subr.mxu0 0.0
    %121 = vmatpush1.msra.mxu0 0.0
    %122 = vmatprep.subr.mxu0 0.0
    %123 = vmatpush1.msra.mxu0 0.0
    %124 = vmatprep.subr.mxu0 0.0
    %125 = vmatpush1.msra.mxu0 0.0
    %126 = vmatprep.subr.mxu0 0.0
    %127 = vmatpush1.msra.mxu0 0.0
    %128 = vmatprep.subr.mxu0 0.0
    %129 = vmatpush1.msra.mxu0 0.0
    %130 = vmatprep.subr.mxu0 0.0
    %131 = vmatpush1.msra.mxu0 0.0
    %132 = vmatprep.subr.mxu0 0.0
    %133 = vmatpush1.msra.mxu0 0.0
    %134 = vmatprep.subr.mxu0 0.0
    %135 = vmatpush1.msra.mxu0 0.0
    %136 = vmatprep.subr.mxu0 0.0
    %137 = vmatpush1.msra.mxu0 0.0
    %138 = vmatprep.subr.mxu0 0.0
    %139 = vmatpush1.msra.mxu0 0.0
    %140 = vmatprep.subr.mxu0 0.0
    %141 = vmatpush1.msra.mxu0 %v100
    %142 = vmatprep.subr.mxu0 0.0
    %143 = vmatpush1.msra.mxu0 %v99
    %144 = vmatprep.subr.mxu0 0.0
    %145 = vmatpush2.msra.mxu0 0.0
    %146 = vmatprep.subr.mxu0 0.0
    %147 = vmatpush2.msra.mxu0 0.0
    %148 = vmatprep.subr.mxu0 0.0
    %149 = vmatpush2.msra.mxu0 0.0
    %150 = vmatprep.subr.mxu0 0.0
    %151 = vmatpush2.msra.mxu0 0.0
    %152 = vmatprep.subr.mxu0 0.0
    %153 = vmatpush2.msra.mxu0 0.0
    %154 = vmatprep.subr.mxu0 0.0
    %155 = vmatpush2.msra.mxu0 0.0
    %156 = vmatprep.subr.mxu0 0.0
    %157 = vmatpush2.msra.mxu0 0.0
    %158 = vmatprep.subr.mxu0 0.0
    %159 = vmatpush2.msra.mxu0 0.0
    %160 = vmatprep.subr.mxu0 0.0
    %161 = vmatpush2.msra.mxu0 0.0
    %162 = vmatprep.subr.mxu0 0.0
    %163 = vmatpush2.msra.mxu0 0.0
    %164 = vmatprep.subr.mxu0 0.0
    %165 = vmatpush2.msra.mxu0 0.0
    %166 = vmatprep.subr.mxu0 0.0
    %167 = vmatpush2.msra.mxu0 0.0
    %168 = vmatprep.subr.mxu0 0.0
    %169 = vmatpush2.msra.mxu0 0.0
    %170 = vmatprep.subr.mxu0 0.0
    %171 = vmatpush2.msra.mxu0 0.0
    %172 = vmatprep.subr.mxu0 0.0
    %173 = vmatpush2.msra.mxu0 0.0
    %174 = vmatprep.subr.mxu0 0.0
    %175 = vmatpush2.msra.mxu0 0.0
    %176 = vmatprep.mubr.f32.mxu0 0.0
    %177 = vmatmul.mubr.f32.gmra.mxu0 %v110
    %v178 = vpop.f32.mrf.mxu0
    %v179 = vadd.f32 %v106, %v178
    %v180 = vpop.f32.mrf.mxu0
    %181 = vdwg.mxu0
    %vm182 = vcmp.ge.f32.partialorder %v179, 0.0
    %v183 = vmul.f32 %v179, 0.01
    %v184 = vsel %vm182, %v179, %v183
    %v185 = vld [vmem:[#allocation6] sm:$0xff]
    %v186 = vld [vmem:[#allocation6 + $0x8] sm:$0xff]
    %v187 = vld [vmem:[#allocation6 + $0x10] sm:$0xff]
    %v188 = vld [vmem:[#allocation6 + $0x18] sm:$0xff]
    %v189 = vld [vmem:[#allocation6 + $0x20] sm:$0xff]
    %v190 = vld [vmem:[#allocation6 + $0x28] sm:$0xff]
    %v191 = vld [vmem:[#allocation6 + $0x30] sm:$0xff]
    %v192 = vld [vmem:[#allocation6 + $0x38] sm:$0xff]
    %v193 = vld [vmem:[#allocation6 + $0x40] sm:$0xff]
    %v194 = vld [vmem:[#allocation6 + $0x48] sm:$0xff]
    %v195 = vld [vmem:[#allocation6 + $0x50] sm:$0xff]
    %v196 = vld [vmem:[#allocation6 + $0x58] sm:$0xff]
    %v197 = vld [vmem:[#allocation6 + $0x60] sm:$0xff]
    %v198 = vld [vmem:[#allocation6 + $0x68] sm:$0xff]
    %v199 = vld [vmem:[#allocation6 + $0x70] sm:$0xff]
    %v200 = vld [vmem:[#allocation6 + $0x78] sm:$0xff]
    %v201 = vld [vmem:[%s4] sm:$0x1]
    %v203 = vlaneseq
    %v204 = vshrl.u32 %v203, 7
    %v205 = vsub.s32 0, %v204
    %v206 = vrot.slane %v201, %v205
    %208 = vmatprep.subr.mxu0 0.0
    %209 = vmatpush1.msra.mxu0 %v200
    %210 = vmatprep.subr.mxu0 0.0
    %211 = vmatpush1.msra.mxu0 %v199
    %212 = vmatprep.subr.mxu0 0.0
    %213 = vmatpush1.msra.mxu0 %v198
    %214 = vmatprep.subr.mxu0 0.0
    %215 = vmatpush1.msra.mxu0 %v197
    %216 = vmatprep.subr.mxu0 0.0
    %217 = vmatpush1.msra.mxu0 %v196
    %218 = vmatprep.subr.mxu0 0.0
    %219 = vmatpush1.msra.mxu0 %v195
    %220 = vmatprep.subr.mxu0 0.0
    %221 = vmatpush1.msra.mxu0 %v194
    %222 = vmatprep.subr.mxu0 0.0
    %223 = vmatpush1.msra.mxu0 %v193
    %224 = vmatprep.subr.mxu0 0.0
    %225 = vmatpush1.msra.mxu0 %v192
    %226 = vmatprep.subr.mxu0 0.0
    %227 = vmatpush1.msra.mxu0 %v191
    %228 = vmatprep.subr.mxu0 0.0
    %229 = vmatpush1.msra.mxu0 %v190
    %230 = vmatprep.subr.mxu0 0.0
    %231 = vmatpush1.msra.mxu0 %v189
    %232 = vmatprep.subr.mxu0 0.0
    %233 = vmatpush1.msra.mxu0 %v188
    %234 = vmatprep.subr.mxu0 0.0
    %235 = vmatpush1.msra.mxu0 %v187
    %236 = vmatprep.subr.mxu0 0.0
    %237 = vmatpush1.msra.mxu0 %v186
    %238 = vmatprep.subr.mxu0 0.0
    %239 = vmatpush1.msra.mxu0 %v185
    %240 = vmatprep.subr.mxu0 0.0
    %241 = vmatpush2.msra.mxu0 0.0
    %242 = vmatprep.subr.mxu0 0.0
    %243 = vmatpush2.msra.mxu0 0.0
    %244 = vmatprep.subr.mxu0 0.0
    %245 = vmatpush2.msra.mxu0 0.0
    %246 = vmatprep.subr.mxu0 0.0
    %247 = vmatpush2.msra.mxu0 0.0
    %248 = vmatprep.subr.mxu0 0.0
    %249 = vmatpush2.msra.mxu0 0.0
    %250 = vmatprep.subr.mxu0 0.0
    %251 = vmatpush2.msra.mxu0 0.0
    %252 = vmatprep.subr.mxu0 0.0
    %253 = vmatpush2.msra.mxu0 0.0
    %254 = vmatprep.subr.mxu0 0.0
    %255 = vmatpush2.msra.mxu0 0.0
    %256 = vmatprep.subr.mxu0 0.0
    %257 = vmatpush2.msra.mxu0 0.0
    %258 = vmatprep.subr.mxu0 0.0
    %259 = vmatpush2.msra.mxu0 0.0
    %260 = vmatprep.subr.mxu0 0.0
    %261 = vmatpush2.msra.mxu0 0.0
    %262 = vmatprep.subr.mxu0 0.0
    %263 = vmatpush2.msra.mxu0 0.0
    %264 = vmatprep.subr.mxu0 0.0
    %265 = vmatpush2.msra.mxu0 0.0
    %266 = vmatprep.subr.mxu0 0.0
    %267 = vmatpush2.msra.mxu0 0.0
    %268 = vmatprep.subr.mxu0 0.0
    %269 = vmatpush2.msra.mxu0 0.0
    %270 = vmatprep.subr.mxu0 0.0
    %271 = vmatpush2.msra.mxu0 0.0
    %272 = vmatprep.mubr.f32.mxu0 0.0
    %273 = vmatmul.mubr.f32.gmra.mxu0 %v184
    %v274 = vpop.f32.mrf.mxu0
    %v275 = vadd.f32 %v206, %v274
    %v276 = vpop.f32.mrf.mxu0
    %277 = vdwg.mxu0
    %vm278 = vcmp.ge.f32.partialorder %v275, 0.0
    %v279 = vmul.f32 %v275, 0.01
    %v280 = vsel %vm278, %v275, %v279
    %v281 = vld [vmem:[#allocation7] sm:$0xff]
    %v282 = vld [vmem:[#allocation7 + $0x8] sm:$0xff]
    %v283 = vld [vmem:[#allocation7 + $0x10] sm:$0xff]
    %v284 = vld [vmem:[#allocation7 + $0x18] sm:$0xff]
    %v285 = vld [vmem:[#allocation7 + $0x20] sm:$0xff]
    %v286 = vld [vmem:[#allocation7 + $0x28] sm:$0xff]
    %v287 = vld [vmem:[#allocation7 + $0x30] sm:$0xff]
    %v288 = vld [vmem:[#allocation7 + $0x38] sm:$0xff]
    %v289 = vld [vmem:[#allocation7 + $0x40] sm:$0xff]
    %v290 = vld [vmem:[#allocation7 + $0x48] sm:$0xff]
    %v291 = vld [vmem:[#allocation7 + $0x50] sm:$0xff]
    %v292 = vld [vmem:[#allocation7 + $0x58] sm:$0xff]
    %v293 = vld [vmem:[#allocation7 + $0x60] sm:$0xff]
    %v294 = vld [vmem:[#allocation7 + $0x68] sm:$0xff]
    %v295 = vld [vmem:[#allocation7 + $0x70] sm:$0xff]
    %v296 = vld [vmem:[#allocation7 + $0x78] sm:$0xff]
    %v297 = vld [vmem:[%s6] sm:$0x1]
    %v299 = vlaneseq
    %v300 = vshrl.u32 %v299, 7
    %v301 = vsub.s32 0, %v300
    %v302 = vrot.slane %v297, %v301
    %304 = vmatprep.subr.mxu0 0.0
    %305 = vmatpush1.msra.mxu0 %v296
    %306 = vmatprep.subr.mxu0 0.0
    %307 = vmatpush1.msra.mxu0 %v295
    %308 = vmatprep.subr.mxu0 0.0
    %309 = vmatpush1.msra.mxu0 %v294
    %310 = vmatprep.subr.mxu0 0.0
    %311 = vmatpush1.msra.mxu0 %v293
    %312 = vmatprep.subr.mxu0 0.0
    %313 = vmatpush1.msra.mxu0 %v292
    %314 = vmatprep.subr.mxu0 0.0
    %315 = vmatpush1.msra.mxu0 %v291
    %316 = vmatprep.subr.mxu0 0.0
    %317 = vmatpush1.msra.mxu0 %v290
    %318 = vmatprep.subr.mxu0 0.0
    %319 = vmatpush1.msra.mxu0 %v289
    %320 = vmatprep.subr.mxu0 0.0
    %321 = vmatpush1.msra.mxu0 %v288
    %322 = vmatprep.subr.mxu0 0.0
    %323 = vmatpush1.msra.mxu0 %v287
    %324 = vmatprep.subr.mxu0 0.0
    %325 = vmatpush1.msra.mxu0 %v286
    %326 = vmatprep.subr.mxu0 0.0
    %327 = vmatpush1.msra.mxu0 %v285
    %328 = vmatprep.subr.mxu0 0.0
    %329 = vmatpush1.msra.mxu0 %v284
    %330 = vmatprep.subr.mxu0 0.0
    %331 = vmatpush1.msra.mxu0 %v283
    %332 = vmatprep.subr.mxu0 0.0
    %333 = vmatpush1.msra.mxu0 %v282
    %334 = vmatprep.subr.mxu0 0.0
    %335 = vmatpush1.msra.mxu0 %v281
    %336 = vmatprep.subr.mxu0 0.0
    %337 = vmatpush2.msra.mxu0 0.0
    %338 = vmatprep.subr.mxu0 0.0
    %339 = vmatpush2.msra.mxu0 0.0
    %340 = vmatprep.subr.mxu0 0.0
    %341 = vmatpush2.msra.mxu0 0.0
    %342 = vmatprep.subr.mxu0 0.0
    %343 = vmatpush2.msra.mxu0 0.0
    %344 = vmatprep.subr.mxu0 0.0
    %345 = vmatpush2.msra.mxu0 0.0
    %346 = vmatprep.subr.mxu0 0.0
    %347 = vmatpush2.msra.mxu0 0.0
    %348 = vmatprep.subr.mxu0 0.0
    %349 = vmatpush2.msra.mxu0 0.0
    %350 = vmatprep.subr.mxu0 0.0
    %351 = vmatpush2.msra.mxu0 0.0
    %352 = vmatprep.subr.mxu0 0.0
    %353 = vmatpush2.msra.mxu0 0.0
    %354 = vmatprep.subr.mxu0 0.0
    %355 = vmatpush2.msra.mxu0 0.0
    %356 = vmatprep.subr.mxu0 0.0
    %357 = vmatpush2.msra.mxu0 0.0
    %358 = vmatprep.subr.mxu0 0.0
    %359 = vmatpush2.msra.mxu0 0.0
    %360 = vmatprep.subr.mxu0 0.0
    %361 = vmatpush2.msra.mxu0 0.0
    %362 = vmatprep.subr.mxu0 0.0
    %363 = vmatpush2.msra.mxu0 0.0
    %364 = vmatprep.subr.mxu0 0.0
    %365 = vmatpush2.msra.mxu0 0.0
    %366 = vmatprep.subr.mxu0 0.0
    %367 = vmatpush2.msra.mxu0 0.0
    %368 = vmatprep.mubr.f32.mxu0 0.0
    %369 = vmatmul.mubr.f32.gmra.mxu0 %v280
    %v370 = vpop.f32.mrf.mxu0
    %v371 = vadd.f32 %v302, %v370
    %v372 = vpop.f32.mrf.mxu0
    %373 = vdwg.mxu0
    %v374 = vld [vmem:[#allocation9] sm:$0xff]
    %v375 = vld [vmem:[#allocation9 + $0x8] sm:$0xff]
    %v376 = vld [vmem:[#allocation9 + $0x10] sm:$0xff]
    %v377 = vld [vmem:[#allocation9 + $0x18] sm:$0xff]
    %v378 = vld [vmem:[#allocation9 + $0x20] sm:$0xff]
    %v379 = vld [vmem:[#allocation9 + $0x28] sm:$0xff]
    %v380 = vld [vmem:[#allocation9 + $0x30] sm:$0xff]
    %v381 = vld [vmem:[#allocation9 + $0x38] sm:$0xff]
    %v382 = vld [vmem:[#allocation9 + $0x40] sm:$0xff]
    %v383 = vld [vmem:[#allocation9 + $0x48] sm:$0xff]
    %v384 = vld [vmem:[#allocation9 + $0x50] sm:$0xff]
    %v385 = vld [vmem:[#allocation9 + $0x58] sm:$0xff]
    %v386 = vld [vmem:[#allocation9 + $0x60] sm:$0xff]
    %v387 = vld [vmem:[#allocation9 + $0x68] sm:$0xff]
    %v388 = vld [vmem:[#allocation9 + $0x70] sm:$0xff]
    %v389 = vld [vmem:[#allocation9 + $0x78] sm:$0xff]
    %v390 = vld [vmem:[%s8] sm:$0x1]
    %v392 = vlaneseq
    %v393 = vshrl.u32 %v392, 7
    %v394 = vsub.s32 0, %v393
    %v395 = vrot.slane %v390, %v394
    %397 = vmatprep.subr.mxu0 0.0
    %398 = vmatpush1.msra.mxu0 %v389
    %399 = vmatprep.subr.mxu0 0.0
    %400 = vmatpush1.msra.mxu0 %v388
    %401 = vmatprep.subr.mxu0 0.0
    %402 = vmatpush1.msra.mxu0 %v387
    %403 = vmatprep.subr.mxu0 0.0
    %404 = vmatpush1.msra.mxu0 %v386
    %405 = vmatprep.subr.mxu0 0.0
    %406 = vmatpush1.msra.mxu0 %v385
    %407 = vmatprep.subr.mxu0 0.0
    %408 = vmatpush1.msra.mxu0 %v384
    %409 = vmatprep.subr.mxu0 0.0
    %410 = vmatpush1.msra.mxu0 %v383
    %411 = vmatprep.subr.mxu0 0.0
    %412 = vmatpush1.msra.mxu0 %v382
    %413 = vmatprep.subr.mxu0 0.0
    %414 = vmatpush1.msra.mxu0 %v381
    %415 = vmatprep.subr.mxu0 0.0
    %416 = vmatpush1.msra.mxu0 %v380
    %417 = vmatprep.subr.mxu0 0.0
    %418 = vmatpush1.msra.mxu0 %v379
    %419 = vmatprep.subr.mxu0 0.0
    %420 = vmatpush1.msra.mxu0 %v378
    %421 = vmatprep.subr.mxu0 0.0
    %422 = vmatpush1.msra.mxu0 %v377
    %423 = vmatprep.subr.mxu0 0.0
    %424 = vmatpush1.msra.mxu0 %v376
    %425 = vmatprep.subr.mxu0 0.0
    %426 = vmatpush1.msra.mxu0 %v375
    %427 = vmatprep.subr.mxu0 0.0
    %428 = vmatpush1.msra.mxu0 %v374
    %429 = vmatprep.subr.mxu0 0.0
    %430 = vmatpush2.msra.mxu0 0.0
    %431 = vmatprep.subr.mxu0 0.0
    %432 = vmatpush2.msra.mxu0 0.0
    %433 = vmatprep.subr.mxu0 0.0
    %434 = vmatpush2.msra.mxu0 0.0
    %435 = vmatprep.subr.mxu0 0.0
    %436 = vmatpush2.msra.mxu0 0.0
    %437 = vmatprep.subr.mxu0 0.0
    %438 = vmatpush2.msra.mxu0 0.0
    %439 = vmatprep.subr.mxu0 0.0
    %440 = vmatpush2.msra.mxu0 0.0
    %441 = vmatprep.subr.mxu0 0.0
    %442 = vmatpush2.msra.mxu0 0.0
    %443 = vmatprep.subr.mxu0 0.0
    %444 = vmatpush2.msra.mxu0 0.0
    %445 = vmatprep.subr.mxu0 0.0
    %446 = vmatpush2.msra.mxu0 0.0
    %447 = vmatprep.subr.mxu0 0.0
    %448 = vmatpush2.msra.mxu0 0.0
    %449 = vmatprep.subr.mxu0 0.0
    %450 = vmatpush2.msra.mxu0 0.0
    %451 = vmatprep.subr.mxu0 0.0
    %452 = vmatpush2.msra.mxu0 0.0
    %453 = vmatprep.subr.mxu0 0.0
    %454 = vmatpush2.msra.mxu0 0.0
    %455 = vmatprep.subr.mxu0 0.0
    %456 = vmatpush2.msra.mxu0 0.0
    %457 = vmatprep.subr.mxu0 0.0
    %458 = vmatpush2.msra.mxu0 0.0
    %459 = vmatprep.subr.mxu0 0.0
    %460 = vmatpush2.msra.mxu0 0.0
    %461 = vmatprep.mubr.f32.mxu0 0.0
    %462 = vmatmul.mubr.f32.gmra.mxu0 %v371
    %v463 = vpop.f32.mrf.mxu0
    %v464 = vadd.f32 %v395, %v463
    %v465 = vpop.f32.mrf.mxu0
    %466 = vdwg.mxu0
    %v467 = vlaneseq
    %v468 = vand.u32 %v467, 127
    %vm469 = vcmp.ge.s32.totalorder %v468, 8
    %vm470 = vcmp.lt.s32.totalorder %v468, 16
    %vm471 = vmand %vm469, %vm470
    %v472 = vmax.f32 %v464, -20.0
    %v473 = vmin.f32 %v472, 2.0
    %v474 = vsel %vm471, %v473, %v464
    %475 = vst [vmem:[%s9] sm:$0xff] %v474
    // Predicated region
    $region58: #{actor_forward.1} parent=1 // pred_check
      _
    $region59: #{actor_forward.1} parent=1 // pred_check_branch
      %477 = sbr.rel (0) target = $region61
    $region60: #{actor_forward.1} parent=1 // pred_region
      _
    $region61: #{actor_forward.1} parent=1 // pred_fallthru
      _
    // Predicated region
    $region62: #{actor_forward.1} parent=1 // pred_check
      _
    $region63: #{actor_forward.1} parent=1 // pred_check_branch
      %479 = sbr.rel (0) target = $region65
    $region64: #{actor_forward.1} parent=1 // pred_region
      _
    $region65: #{actor_forward.1} parent=1 // pred_fallthru
      _
    %480 = vsyncpa [#allocation3], 1
    %481 = vsyncpa [#allocation5], 1
    %482 = vsyncpa [#allocation8], 1

</llo_original>
